<compile_context>
chip_gen: v7x
topology: tpu7x:2x2x1
jax: 0.10.0
libtpu: 0.0.40
codegen_flags: <defaults>
</compile_context>

<pallas_src>
import functools
import math

import jax
import jax.numpy as jnp
from jax import lax
from jax.experimental import pallas as pl
from jax.experimental.pallas import tpu as pltpu


# bias_act def_gain table (only the activations wired up here).
_DEF_GAIN = {
    'linear': 1.0,
    'lrelu': math.sqrt(2.0),
}


def _choose_tile(dim, candidates):
    """Largest candidate that evenly divides `dim`, else the full dim."""
    for c in candidates:
        if dim % c == 0:
            return c
    return dim


def _round_up(x, m):
    return ((x + m - 1) // m) * m


def _conv_matmul_kernel(w_ref, p_ref, b_ref, o_ref, acc_ref, *,
                        wscale, activation_type, act_gain, act_clamp):
    # w_ref:   (tn, tk)      weight tile, raw (unscaled) values
    # p_ref:   (1, tk, tl)   im2col patches tile for one batch element
    # b_ref:   (tn, 1)       precomputed f32 bias * bscale
    # o_ref:   (1, tn, tl)   output tile (NCHW-flat: channels x pixels)
    # acc_ref: (tn, tl)      f32 accumulator scratch
    k = pl.program_id(3)

    @pl.when(k == 0)
    def _init():
        acc_ref[...] = jnp.zeros_like(acc_ref)

    acc_ref[...] += jnp.dot(w_ref[...], p_ref[0],
                            preferred_element_type=jnp.float32)

    @pl.when(k == pl.num_programs(3) - 1)
    def _epilogue():
        acc = acc_ref[...]
        if wscale != 1.0:
            # Fold wscale into the f32 accumulator (cheaper and more precise
            # than scaling every weight tile in its storage dtype).
            acc = acc * jnp.float32(wscale)
        acc = acc + b_ref[...]                       # (tn, 1) broadcast over lanes
        if activation_type == 'lrelu':
            acc = jnp.where(acc >= 0, acc, acc * jnp.float32(0.2))
        elif activation_type == 'linear':
            pass
        else:
            # TODO(synk): other bias_act activations (relu/tanh/sigmoid/...) not wired up.
            raise NotImplementedError(activation_type)
        if act_gain != 1.0:
            acc = acc * jnp.float32(act_gain)
        if act_clamp is not None:
            c = jnp.float32(act_clamp)
            acc = jnp.clip(acc, -c, c)
        o_ref[0] = acc.astype(o_ref.dtype)


def conv_layer_forward(x, weight, bias, *, wscale, bscale, kernel_size,
                       scale_factor=1, filter_kernel=None,
                       activation_type='lrelu', conv_clamp=None,
                       runtime_gain=1.0):
    """Fused ConvLayer forward. x: (B, C, H, W) NCHW; weight: (O, I, kh, kw)."""
    if scale_factor != 1:
        # TODO(synk): downsampling path (upfirdn2d FIR filter + strided conv) not implemented.
        raise NotImplementedError("scale_factor > 1 is not supported by this kernel")
    if activation_type not in _DEF_GAIN:
        raise NotImplementedError(activation_type)

    dtype = x.dtype
    B, C, H, W = x.shape
    N = weight.shape[0]
    kh = kw = kernel_size
    pad = kernel_size // 2
    K = C * kh * kw
    L = H * W

    # --- im2col (layout plumbing in plain JAX). Ordering is (c, dy, dx), which
    # matches a free reshape of the (O, I, kh, kw) weight -> (O, I*kh*kw).
    x_pad = jnp.pad(x, ((0, 0), (0, 0), (pad, pad), (pad, pad)))
    cols = []
    for dy in range(kh):
        for dx in range(kw):
            cols.append(x_pad[:, :, dy:dy + H, dx:dx + W])       # (B, C, H, W)
    patches = jnp.stack(cols, axis=2).reshape(B, K, L).astype(dtype)

    # Zero-pad the pixel (lane) axis to a multiple of 128 so stores are
    # lane-dense and tiles stay legal for arbitrary H*W. Padding pixels
    # produce harmless finite values and are sliced off below.
    L_pad = max(_round_up(L, 128), 128)
    if L_pad != L:
        patches = jnp.pad(patches, ((0, 0), (0, 0), (0, L_pad - L)))

    w_mat = weight.reshape(N, K).astype(dtype)                   # free reshape, no transpose
    if bias is None:
        bias_eff = jnp.zeros((N, 1), jnp.float32)
    else:
        bias_eff = (bias.astype(jnp.float32) * jnp.float32(bscale)).reshape(N, 1)

    act_gain = _DEF_GAIN[activation_type] * float(runtime_gain)
    act_clamp = None if conv_clamp is None else float(conv_clamp) * float(runtime_gain)

    # --- tiling (128-aligned lane tiles; full-dim fallback keeps layout legal).
    tn = _choose_tile(N, (256, 128))
    tk = _choose_tile(K, (512, 256, 128))
    tl = _choose_tile(L_pad, (1024, 512, 256, 128))
    grid = (B, N // tn, L_pad // tl, K // tk)

    kernel = functools.partial(
        _conv_matmul_kernel,
        wscale=float(wscale),
        activation_type=activation_type,
        act_gain=act_gain,
        act_clamp=act_clamp,
    )

    itemsize = jnp.dtype(dtype).itemsize
    cost = pl.CostEstimate(
        flops=2 * B * N * K * L_pad,
        transcendentals=0,
        bytes_accessed=(B * K * L_pad + N * K + B * N * L_pad) * itemsize,
    )

    out = pl.pallas_call(
        kernel,
        out_shape=jax.ShapeDtypeStruct((B, N, L_pad), dtype),
        grid_spec=pltpu.PrefetchScalarGridSpec(
            num_scalar_prefetch=0,
            grid=grid,
            in_specs=[
                pl.BlockSpec((tn, tk), lambda b, n, l, k: (n, k)),
                pl.BlockSpec((1, tk, tl), lambda b, n, l, k: (b, k, l)),
                pl.BlockSpec((tn, 1), lambda b, n, l, k: (n, 0)),
            ],
            out_specs=pl.BlockSpec((1, tn, tl), lambda b, n, l, k: (b, n, l)),
            scratch_shapes=[pltpu.VMEM((tn, tl), jnp.float32)],
        ),
        compiler_params=pltpu.CompilerParams(
            dimension_semantics=("parallel", "parallel", "parallel", "arbitrary")),
        cost_estimate=cost,
    )(w_mat, patches, bias_eff)

    if L_pad != L:
        out = out[:, :, :L]
    return out.reshape(B, N, H, W)


def make_params(key, in_channels, out_channels, kernel_size, *, use_wscale,
                wscale_gain, lr_mul, add_bias):
    """Deterministic parameter init mirroring ConvLayer.__init__."""
    fan_in = kernel_size * kernel_size * in_channels
    wscale = wscale_gain / math.sqrt(fan_in)
    w = jax.random.normal(
        key, (out_channels, in_channels, kernel_size, kernel_size), dtype=jnp.float32)
    if use_wscale:
        weight = w / lr_mul
        eff_wscale = wscale * lr_mul
    else:
        weight = w * wscale / lr_mul
        eff_wscale = lr_mul
    if add_bias:
        bias = jnp.zeros((out_channels,), dtype=jnp.float32)
        bscale = lr_mul
    else:
        bias = None
        bscale = 0.0
    return weight, bias, eff_wscale, bscale


if __name__ == "__main__":
    # Module config (typical VolumeGAN discriminator conv layer, small demo).
    B, C_in, Hs, Ws = 2, 4, 16, 16
    C_out = 32
    kernel_size = 3
    add_bias = True
    scale_factor = 1
    filter_kernel = None
    use_wscale = True
    wscale_gain = 1.0
    lr_mul = 1.0
    activation_type = 'lrelu'
    conv_clamp = 256.0
    runtime_gain = 1.0

    key = jax.random.PRNGKey(0)
    kx, kp, kb = jax.random.split(key, 3)
    x = jax.random.normal(kx, (B, C_in, Hs, Ws), dtype=jnp.float32)

    weight, bias, wscale, bscale = make_params(
        kp, C_in, C_out, kernel_size,
        use_wscale=use_wscale, wscale_gain=wscale_gain,
        lr_mul=lr_mul, add_bias=add_bias)
    # ConvLayer inits bias to zeros; use non-zero values here so the fused
    # bias path is actually exercised (as with a trained checkpoint).
    bias = 0.1 * jax.random.normal(kb, (C_out,), dtype=jnp.float32)

    y = conv_layer_forward(
        x, weight, bias,
        wscale=wscale, bscale=bscale, kernel_size=kernel_size,
        scale_factor=scale_factor, filter_kernel=filter_kernel,
        activation_type=activation_type, conv_clamp=conv_clamp,
        runtime_gain=runtime_gain)
    y = jax.block_until_ready(y)

    # Pure-JAX reference for sanity.
    pad = kernel_size // 2
    w_eff = weight * wscale
    ref = lax.conv_general_dilated(
        x, w_eff, window_strides=(1, 1), padding=((pad, pad), (pad, pad)),
        dimension_numbers=('NCHW', 'OIHW', 'NCHW'))
    ref = ref + (bias * bscale).reshape(1, -1, 1, 1)
    ref = jnp.where(ref >= 0, ref, 0.2 * ref)                   # lrelu(0.2)
    ref = ref * (math.sqrt(2.0) * runtime_gain)                 # def_gain * runtime_gain
    if conv_clamp is not None:
        c = conv_clamp * runtime_gain
        ref = jnp.clip(ref, -c, c)

    assert y.shape == (B, C_out, Hs, Ws)
    assert y.dtype == x.dtype
    assert jnp.allclose(y, ref, atol=1e-4, rtol=1e-4)

    print("KERNEL_OK")
</pallas_src>

<mosaic_0001>
module attributes {stable_mosaic.version = 11 : i64} {
  func.func @_conv_matmul_kernel(%arg0: i32, %arg1: i32, %arg2: i32, %arg3: i32, %arg4: memref<32x36xf32, #tpu.memory_space<vmem>>, %arg5: memref<1x36x256xf32, #tpu.memory_space<vmem>>, %arg6: memref<32x1xf32, #tpu.memory_space<vmem>>, %arg7: memref<1x32x256xf32, #tpu.memory_space<vmem>>, %arg8: memref<32x256xf32, #tpu.memory_space<vmem>>) attributes {dimension_semantics = [#tpu.dimension_semantics<parallel>, #tpu.dimension_semantics<parallel>, #tpu.dimension_semantics<parallel>, #tpu.dimension_semantics<arbitrary>], iteration_bounds = array<i64: 2, 1, 1, 1>, scalar_prefetch = 0 : i64, scratch_operands = 1 : i64, tpu.core_type = #tpu.core_type<tc>, window_params = [{transform_indices = @transform_0, window_bounds = array<i64: 32, 36>}, {transform_indices = @transform_1, window_bounds = array<i64: 1, 36, 256>}, {transform_indices = @transform_2, window_bounds = array<i64: 32, 1>}, {transform_indices = @transform_3, window_bounds = array<i64: 1, 32, 256>}]} {
    %c0_i32 = arith.constant 0 : i32
    %0 = arith.cmpi eq, %arg3, %c0_i32 : i32
    %1 = arith.extui %0 : i1 to i32
    %c0_i32_0 = arith.constant 0 : i32
    %2 = arith.cmpi ne, %1, %c0_i32_0 : i32
    scf.if %2 {
      %cst_11 = arith.constant 0.000000e+00 : f32
      %13 = vector.broadcast %cst_11 : f32 to vector<32x256xf32>
      %c0_12 = arith.constant 0 : index
      %c0_13 = arith.constant 0 : index
      %14 = vector.load %arg8[%c0_12, %c0_13] : memref<32x256xf32, #tpu.memory_space<vmem>>, vector<32x256xf32>
      tpu.vector_store %arg8[%c0_12, %c0_13], %13 {strides = array<i32>} : memref<32x256xf32, #tpu.memory_space<vmem>>, vector<32x256xf32>,
    } else {
    }
    %c0 = arith.constant 0 : index
    %c0_1 = arith.constant 0 : index
    %3 = vector.load %arg8[%c0, %c0_1] : memref<32x256xf32, #tpu.memory_space<vmem>>, vector<32x256xf32>
    %c0_2 = arith.constant 0 : index
    %c0_3 = arith.constant 0 : index
    %4 = vector.load %arg4[%c0_2, %c0_3] : memref<32x36xf32, #tpu.memory_space<vmem>>, vector<32x36xf32>
    %c0_4 = arith.constant 0 : index
    %c0_5 = arith.constant 0 : index
    %c0_6 = arith.constant 0 : index
    %5 = vector.load %arg5[%c0_4, %c0_5, %c0_6] : memref<1x36x256xf32, #tpu.memory_space<vmem>>, vector<1x36x256xf32>
    %6 = vector.shape_cast %5 : vector<1x36x256xf32> to vector<36x256xf32>
    %cst = arith.constant dense<0.000000e+00> : vector<32x256xf32>
    %7 = tpu.matmul %4, %6, %cst {dimension_numbers = #tpu.dot_dimension_numbers<[1], [0], [0], [1], [0, 0, 1, 1], [], []>} : vector<32x36xf32>, vector<36x256xf32>, vector<32x256xf32> -> vector<32x256xf32>
    %8 = arith.addf %3, %7 : vector<32x256xf32>
    %c0_7 = arith.constant 0 : index
    %c0_8 = arith.constant 0 : index
    %9 = vector.load %arg8[%c0_7, %c0_8] : memref<32x256xf32, #tpu.memory_space<vmem>>, vector<32x256xf32>
    tpu.vector_store %arg8[%c0_7, %c0_8], %8 {strides = array<i32>} : memref<32x256xf32, #tpu.memory_space<vmem>>, vector<32x256xf32>,
    %c0_i32_9 = arith.constant 0 : i32
    %10 = arith.cmpi eq, %arg3, %c0_i32_9 : i32
    %11 = arith.extui %10 : i1 to i32
    %c0_i32_10 = arith.constant 0 : i32
    %12 = arith.cmpi ne, %11, %c0_i32_10 : i32
    scf.if %12 {
      %c0_11 = arith.constant 0 : index
      %c0_12 = arith.constant 0 : index
      %13 = vector.load %arg8[%c0_11, %c0_12] : memref<32x256xf32, #tpu.memory_space<vmem>>, vector<32x256xf32>
      %cst_13 = arith.constant 0.166666672 : f32
      %14 = vector.broadcast %cst_13 : f32 to vector<32x256xf32>
      %15 = arith.mulf %13, %14 : vector<32x256xf32>
      %c0_14 = arith.constant 0 : index
      %c0_15 = arith.constant 0 : index
      %16 = vector.load %arg6[%c0_14, %c0_15] : memref<32x1xf32, #tpu.memory_space<vmem>>, vector<32x1xf32>
      %17 = vector.broadcast %16 : vector<32x1xf32> to vector<32x256xf32>
      %18 = arith.addf %15, %17 : vector<32x256xf32>
      %cst_16 = arith.constant 0.000000e+00 : f32
      %19 = vector.broadcast %cst_16 : f32 to vector<32x256xf32>
      %20 = arith.cmpf oge, %18, %19 : vector<32x256xf32>
      %cst_17 = arith.constant 2.000000e-01 : f32
      %21 = vector.broadcast %cst_17 : f32 to vector<32x256xf32>
      %22 = arith.mulf %18, %21 : vector<32x256xf32>
      %23 = arith.select %20, %18, %22 : vector<32x256xi1>, vector<32x256xf32>
      %cst_18 = arith.constant 1.41421354 : f32
      %24 = vector.broadcast %cst_18 : f32 to vector<32x256xf32>
      %25 = arith.mulf %23, %24 : vector<32x256xf32>
      %cst_19 = arith.constant 0.000000e+00 : f32
      %cst_20 = arith.constant 2.560000e+02 : f32
      %26 = arith.subf %cst_19, %cst_20 : f32
      %cst_21 = arith.constant 2.560000e+02 : f32
      %27 = vector.broadcast %26 : f32 to vector<32x256xf32>
      %28 = arith.maximumf %27, %25 : vector<32x256xf32>
      %29 = vector.broadcast %cst_21 : f32 to vector<32x256xf32>
      %30 = arith.minimumf %29, %28 : vector<32x256xf32>
      %c0_22 = arith.constant 0 : index
      %c0_23 = arith.constant 0 : index
      %c0_24 = arith.constant 0 : index
      %31 = vector.load %arg7[%c0_22, %c0_23, %c0_24] : memref<1x32x256xf32, #tpu.memory_space<vmem>>, vector<1x32x256xf32>
      %32 = vector.shape_cast %31 : vector<1x32x256xf32> to vector<32x256xf32>
      %33 = vector.shape_cast %30 : vector<32x256xf32> to vector<1x32x256xf32>
      tpu.vector_store %arg7[%c0_22, %c0_23, %c0_24], %33 {strides = array<i32>} : memref<1x32x256xf32, #tpu.memory_space<vmem>>, vector<1x32x256xf32>,
    } else {
    }
    return
  }
  func.func @transform_0(%arg0: i32, %arg1: i32, %arg2: i32, %arg3: i32) -> (i32, i32) {
    %c0_i32 = arith.constant 0 : i32
    return %arg1, %arg3 : i32, i32
  }
  func.func @transform_1(%arg0: i32, %arg1: i32, %arg2: i32, %arg3: i32) -> (i32, i32, i32) {
    %c0_i32 = arith.constant 0 : i32
    return %arg0, %arg3, %arg2 : i32, i32, i32
  }
  func.func @transform_2(%arg0: i32, %arg1: i32, %arg2: i32, %arg3: i32) -> (i32, i32) {
    %c0_i32 = arith.constant 0 : i32
    %c0_i32_0 = arith.constant 0 : i32
    return %arg1, %c0_i32 : i32, i32
  }
  func.func @transform_3(%arg0: i32, %arg1: i32, %arg2: i32, %arg3: i32) -> (i32, i32, i32) {
    %c0_i32 = arith.constant 0 : i32
    return %arg0, %arg1, %arg2 : i32, i32, i32
  }
}

</mosaic_0001>

<llo_original>
// kernel: tpu_custom_call.1
$region0: #{tpu_custom_call.1}
  #allocation0 [shape = 'u32[]', space=smem, size = 0x4, offset = 0x4, fixed_abs, tag = 'smem constant byte address 0x4 - core index']
  #allocation1 [shape = 'u32[144,128]{1,0:T(1,128)}', space=vmem, size = 0x12000, scoped, tag = 'internal scratch']
  #allocation2 [shape = 'f32[32,256]{1,0:T(8,128)}', space=vmem, size = 0x8000, scoped, tag = 'scratch operand']
  %s0 = inlined_call_operand.vmem [shape: f32[32,36], index: 0, kind: input, shape index: {}]
  %s1 = inlined_call_operand.vmem [shape: f32[2,36,256], index: 1, kind: input, shape index: {}]
  %s2 = inlined_call_operand.vmem [shape: f32[32,1], index: 2, kind: input, shape index: {}]
  %s3 = inlined_call_operand.hbm [shape: f32[2,32,256], index: 3, kind: output, shape index: {}]
  %s4 = sld [smem:[#allocation0]]
  $region53: #{tpu_custom_call.1} parent=0
    _
  %s6 = ssub.s32 1, %s4
  %s7 = scalar_select 0, %s6, %s4
  $region1: #{tpu_custom_call.1} parent=0
    #allocation3 [shape = 'u8[65536]{0}', space=vmem, size = 0x10000, scoped, tag = 'output window, operand 0']
    #allocation4 [shape = 's32[2]{0}', space=sflag, size = 0x8, scoped, tag = 'scoped memory for tpu_custom_call.1']
    %8 = vsyncpa [#allocation4], 0
    %s9 = scalar_lea.sflag [#allocation4], 1
    %10 = vsyncpa %s9, 0
    loop: start=0, step=1, limit=4
    $region2: #{tpu_custom_call.1} parent=1 // loop_pre_header
      _
    $region3: #{tpu_custom_call.1} parent=1 // loop_header
      %s12 = sphi 0, %s16
      %p13 = scmp.ge.s32.totalorder %s12, 4
      %s19 = sphi 0, %s45
      %s20 = sphi 0, %s41
      %s21 = sphi 0, %s37
      %s22 = sphi 0, %s33
      %s23 = sphi 0, %s19
      %s24 = sphi 0, %s20
      %s25 = sphi 0, %s21
      %s26 = sphi 0, %s22
      %s27 = sphi 0, %s23
      %s28 = sphi 0, %s24
      %s29 = sphi 0, %s25
      %s30 = sphi 0, %s26
      %s50 = sphi 0, %s52
      %s53 = sphi 0, %s50
      %s54 = sphi 0, %s53
      %s70 = sphi 0, %s54
      %s80 = sphi 0, %s82
      %s83 = sphi 0, %s80
      %s84 = sphi 0, %s83
      %s100 = sphi 0, %s84
      %s106 = sphi 0, %s108
      %s109 = sphi 0, %s106
      %s110 = sphi 0, %s109
      %s126 = sphi 0, %s110
      %s136 = sphi 0, %s138
      %s139 = sphi 0, %s136
      %s140 = sphi 0, %s139
      %s156 = sphi 0, %s140
    $region4: #{tpu_custom_call.1} parent=1 // loop_header_branch
      %15 = sbr.rel (%p13) target = $region8
    $region5: #{tpu_custom_call.1} parent=1 // loop_body
      %s17 = ssub.s32 %s12, 1
      %s18 = ssub.s32 %s12, 2
      %s31 = sadd.s32 1, %s22
      %p32 = scmp.ge.s32.totalorder %s31, 1
      %s33 = scalar_select %p32, 0, %s31
      %s34 = sadd.s32 1, %s21
      %s35 = scalar_select %p32, %s34, %s21
      %p36 = scmp.ge.s32.totalorder %s35, 1
      %s37 = scalar_select %p36, 0, %s35
      %s38 = sadd.s32 1, %s20
      %s39 = scalar_select %p36, %s38, %s20
      %p40 = scmp.ge.s32.totalorder %s39, 1
      %s41 = scalar_select %p40, 0, %s39
      %s42 = sadd.s32 1, %s19
      %s43 = scalar_select %p40, %s42, %s19
      %p44 = scmp.ge.s32.totalorder %s43, 2
      %s45 = scalar_select %p44, 0, %s43
      %s46 = ssub.s32 %s20, %s41
      %s47 = ssub.s32 %s22, %s33
      %s48 = sor.u32 %s46, %s47
      %p49 = scmp.eq.s32.totalorder %s48, 0
      %s51 = sadd.s32 %s50, 1
      %s52 = scalar_select %p49, %s50, %s51
      %p55 = pneg %p49
      %p56 = scmp.eq.s32.totalorder %s12, 1
      %p57 = por %p55, %p56
      %p58 = scmp.ne.s32.totalorder %s50, %s53
      %p59 = scmp.eq.s32.totalorder %s12, 0
      %p60 = por %p58, %p59
      %p61 = scmp.ne.s32.totalorder %s50, %s53
      %p62 = scmp.eq.s32.totalorder %s17, 1
      %p63 = por %p61, %p62
      %p64 = scmp.ne.s32.totalorder %s53, %s54
      %p65 = scmp.eq.s32.totalorder %s17, 0
      %p66 = por %p64, %p65
      %p67 = scmp.ne.s32.totalorder %s53, %s54
      %p68 = scmp.eq.s32.totalorder %s18, 1
      %p69 = por %p67, %p68
      %p71 = scmp.ne.s32.totalorder %s54, %s70
      %p72 = scmp.eq.s32.totalorder %s18, 0
      %p73 = por %p71, %p72
      %s74 = ssub.s32 %s19, %s45
      %s75 = ssub.s32 %s22, %s33
      %s76 = sor.u32 %s74, %s75
      %s77 = ssub.s32 %s21, %s37
      %s78 = sor.u32 %s76, %s77
      %p79 = scmp.eq.s32.totalorder %s78, 0
      %s81 = sadd.s32 %s80, 1
      %s82 = scalar_select %p79, %s80, %s81
      %p85 = pneg %p79
      %p86 = scmp.eq.s32.totalorder %s12, 1
      %p87 = por %p85, %p86
      %p88 = scmp.ne.s32.totalorder %s80, %s83
      %p89 = scmp.eq.s32.totalorder %s12, 0
      %p90 = por %p88, %p89
      %p91 = scmp.ne.s32.totalorder %s80, %s83
      %p92 = scmp.eq.s32.totalorder %s17, 1
      %p93 = por %p91, %p92
      %p94 = scmp.ne.s32.totalorder %s83, %s84
      %p95 = scmp.eq.s32.totalorder %s17, 0
      %p96 = por %p94, %p95
      %p97 = scmp.ne.s32.totalorder %s83, %s84
      %p98 = scmp.eq.s32.totalorder %s18, 1
      %p99 = por %p97, %p98
      %p101 = scmp.ne.s32.totalorder %s84, %s100
      %p102 = scmp.eq.s32.totalorder %s18, 0
      %p103 = por %p101, %p102
      %s104 = ssub.s32 %s20, %s41
      %p105 = scmp.eq.s32.totalorder %s104, 0
      %s107 = sadd.s32 %s106, 1
      %s108 = scalar_select %p105, %s106, %s107
      %p111 = pneg %p105
      %p112 = scmp.eq.s32.totalorder %s12, 1
      %p113 = por %p111, %p112
      %p114 = scmp.ne.s32.totalorder %s106, %s109
      %p115 = scmp.eq.s32.totalorder %s12, 0
      %p116 = por %p114, %p115
      %p117 = scmp.ne.s32.totalorder %s106, %s109
      %p118 = scmp.eq.s32.totalorder %s17, 1
      %p119 = por %p117, %p118
      %p120 = scmp.ne.s32.totalorder %s109, %s110
      %p121 = scmp.eq.s32.totalorder %s17, 0
      %p122 = por %p120, %p121
      %p123 = scmp.ne.s32.totalorder %s109, %s110
      %p124 = scmp.eq.s32.totalorder %s18, 1
      %p125 = por %p123, %p124
      %p127 = scmp.ne.s32.totalorder %s110, %s126
      %p128 = scmp.eq.s32.totalorder %s18, 0
      %p129 = por %p127, %p128
      %s130 = ssub.s32 %s19, %s45
      %s131 = ssub.s32 %s20, %s41
      %s132 = sor.u32 %s130, %s131
      %s133 = ssub.s32 %s21, %s37
      %s134 = sor.u32 %s132, %s133
      %p135 = scmp.eq.s32.totalorder %s134, 0
      %s137 = sadd.s32 %s136, 1
      %s138 = scalar_select %p135, %s136, %s137
      %p141 = pneg %p135
      %p142 = scmp.eq.s32.totalorder %s12, 1
      %p143 = por %p141, %p142
      %p144 = scmp.ne.s32.totalorder %s136, %s139
      %p145 = scmp.eq.s32.totalorder %s12, 0
      %p146 = por %p144, %p145
      %p147 = scmp.ne.s32.totalorder %s136, %s139
      %p148 = scmp.eq.s32.totalorder %s17, 1
      %p149 = por %p147, %p148
      %p150 = scmp.ne.s32.totalorder %s139, %s140
      %p151 = scmp.eq.s32.totalorder %s17, 0
      %p152 = por %p150, %p151
      %p153 = scmp.ne.s32.totalorder %s139, %s140
      %p154 = scmp.eq.s32.totalorder %s18, 1
      %p155 = por %p153, %p154
      %p157 = scmp.ne.s32.totalorder %s140, %s156
      %p158 = scmp.eq.s32.totalorder %s18, 0
      %p159 = por %p157, %p158
      %p160 = scmp.le.s32.totalorder 1, %s12
      %p161 = scmp.lt.s32.totalorder %s12, 3
      %p162 = pnand %p160, %p161
      %p163 = pneg %p162
      // Predicated region
      $region9: #{tpu_custom_call.1} parent=5 // pred_check
        _
      $region10: #{tpu_custom_call.1} parent=5 // pred_check_branch
        %165 = sbr.rel (%p162) target = $region12
      $region11: #{tpu_custom_call.1} parent=5 // pred_region
        %s166 = ssub.s32 %s12, 1
        // Predicated region
        $region13: #{tpu_custom_call.1} parent=11 // pred_check
          %p167 = pneg %p66
        $region14: #{tpu_custom_call.1} parent=11 // pred_check_branch
          %169 = sbr.rel (%p167) target = $region16
        $region15: #{tpu_custom_call.1} parent=11 // pred_region
          %s170 = smul.u32 4, %s24
          %p171 = scmp.lt.s32.totalorder %s170, 3
          %s172 = scalar_select %p171, %s170, 3
          %p173 = scmp.lt.s32.totalorder %s26, 0
          %s174 = scalar_select %p173, %s26, 0
          %s175 = sadd.s32 %s174, %s172
          %s176 = smul.addr %s175, 8
          %s177 = scalar_lea.vmem %s0, %s176
          %s178 = smul.u32 4, %s24
        $region16: #{tpu_custom_call.1} parent=11 // pred_fallthru
          _
        // Predicated region
        $region17: #{tpu_custom_call.1} parent=11 // pred_check
          %p179 = pneg %p122
        $region18: #{tpu_custom_call.1} parent=11 // pred_check_branch
          %181 = sbr.rel (%p179) target = $region20
        $region19: #{tpu_custom_call.1} parent=11 // pred_region
          %s182 = smul.u32 4, %s24
          %p183 = scmp.lt.s32.totalorder %s182, 3
          %s184 = scalar_select %p183, %s182, 3
          %s185 = smul.addr %s184, 8
          %s186 = scalar_lea.vmem %s2, %s185
          %s187 = smul.u32 4, %s24
        $region20: #{tpu_custom_call.1} parent=11 // pred_fallthru
          _
      $region12: #{tpu_custom_call.1} parent=5 // pred_fallthru
        _
      %p188 = scmp.lt.s32.totalorder %s12, 2
      // Predicated region
      $region21: #{tpu_custom_call.1} parent=5 // pred_check
        %p189 = pneg %p188
      $region22: #{tpu_custom_call.1} parent=5 // pred_check_branch
        %191 = sbr.rel (%p189) target = $region24
      $region23: #{tpu_custom_call.1} parent=5 // pred_region
        // Predicated region
        $region25: #{tpu_custom_call.1} parent=23 // pred_check
          %p192 = pneg %p90
        $region26: #{tpu_custom_call.1} parent=23 // pred_check_branch
          %194 = sbr.rel (%p192) target = $region28
        $region27: #{tpu_custom_call.1} parent=23 // pred_region
          %s195 = smul.u32 5, %s22
          %s196 = smul.u32 2, %s21
          %p197 = scmp.lt.s32.totalorder %s19, 1
          %s198 = scalar_select %p197, %s19, 1
          %p199 = scmp.lt.s32.totalorder %s195, 4
          %s200 = scalar_select %p199, %s195, 4
          %p201 = scmp.lt.s32.totalorder %s196, 1
          %s202 = scalar_select %p201, %s196, 1
          %s203 = smul.addr %s200, 2
          %s204 = sadd.s32 %s202, %s203
          %s205 = smul.addr %s198, 10
          %s206 = sadd.s32 %s204, %s205
          %s207 = smul.addr %s206, 8
          %s208 = scalar_lea.vmem %s1, %s207
          %s209 = smul.u32 5, %s22
          %s210 = smul.u32 2, %s21
        $region28: #{tpu_custom_call.1} parent=23 // pred_fallthru
          _
      $region24: #{tpu_custom_call.1} parent=5 // pred_fallthru
        _
      %p211 = scmp.le.s32.totalorder 1, %s12
      %p212 = scmp.lt.s32.totalorder %s12, 3
      %p213 = pnand %p211, %p212
      %p214 = pneg %p213
      // Predicated region
      $region29: #{tpu_custom_call.1} parent=5 // pred_check
        _
      $region30: #{tpu_custom_call.1} parent=5 // pred_check_branch
        %216 = sbr.rel (%p213) target = $region32
      $region31: #{tpu_custom_call.1} parent=5 // pred_region
        %s217 = ssub.s32 %s12, 1
        %s218 = smul.u32 4, %s24
        %p219 = scmp.lt.s32.totalorder %s218, 3
        %s220 = scalar_select %p219, %s218, 3
        %p221 = scmp.lt.s32.totalorder %s26, 0
        %s222 = scalar_select %p221, %s26, 0
        %s223 = sadd.s32 %s222, %s220
        %s224 = smul.addr %s223, 8
        %s225 = scalar_lea.vmem %s0, %s224
        %p226 = pneg %p66
        %p227 = pneg %p63
        %s228 = smul.u32 5, %s26
        %s229 = smul.u32 2, %s25
        %p230 = scmp.lt.s32.totalorder %s23, 1
        %s231 = scalar_select %p230, %s23, 1
        %p232 = scmp.lt.s32.totalorder %s228, 4
        %s233 = scalar_select %p232, %s228, 4
        %p234 = scmp.lt.s32.totalorder %s229, 1
        %s235 = scalar_select %p234, %s229, 1
        %s236 = smul.addr %s233, 2
        %s237 = sadd.s32 %s235, %s236
        %s238 = smul.addr %s231, 10
        %s239 = sadd.s32 %s237, %s238
        %s240 = smul.addr %s239, 8
        %s241 = scalar_lea.vmem %s1, %s240
        %p242 = pneg %p96
        %p243 = pneg %p93
        %s244 = smul.u32 4, %s24
        %p245 = scmp.lt.s32.totalorder %s244, 3
        %s246 = scalar_select %p245, %s244, 3
        %s247 = smul.addr %s246, 8
        %s248 = scalar_lea.vmem %s2, %s247
        %p249 = pneg %p122
        %p250 = pneg %p119
        %p251 = pneg %p152
        %p252 = pneg %p149
        %s253 = sand.u32 %s139, 1
        %s254 = scalar_lea.sflag [#allocation4], %s253
        %s255 = sand.u32 %s139, 1
        %s256 = smul.addr %s255, 64
        %s257 = scalar_lea.vmem [#allocation3], %s256
        %s258 = smul.u32 4, %s24
        %p259 = scmp.lt.s32.totalorder %s258, 3
        %s260 = scalar_select %p259, %s258, 3
        %p261 = scmp.lt.s32.totalorder %s26, 0
        %s262 = scalar_select %p261, %s26, 0
        %s263 = sadd.s32 %s262, %s260
        %s264 = smul.addr %s263, 8
        %s265 = scalar_lea.vmem %s0, %s264
        %s266 = smul.u32 4, %s24
        %s267 = smul.u32 5, %s26
        %s268 = smul.u32 2, %s25
        %p269 = scmp.lt.s32.totalorder %s23, 1
        %s270 = scalar_select %p269, %s23, 1
        %p271 = scmp.lt.s32.totalorder %s267, 4
        %s272 = scalar_select %p271, %s267, 4
        %p273 = scmp.lt.s32.totalorder %s268, 1
        %s274 = scalar_select %p273, %s268, 1
        %s275 = smul.addr %s272, 2
        %s276 = sadd.s32 %s274, %s275
        %s277 = smul.addr %s270, 10
        %s278 = sadd.s32 %s276, %s277
        %s279 = smul.addr %s278, 8
        %s280 = scalar_lea.vmem %s1, %s279
        %s281 = smul.u32 5, %s26
        %s282 = smul.u32 2, %s25
        %s283 = smul.u32 4, %s24
        %p284 = scmp.lt.s32.totalorder %s283, 3
        %s285 = scalar_select %p284, %s283, 3
        %s286 = smul.addr %s285, 8
        %s287 = scalar_lea.vmem %s2, %s286
        %s288 = smul.u32 4, %s24
        %s289 = smul.u32 4, %s24
        %s290 = smul.u32 2, %s25
        %p291 = scmp.eq.s32.totalorder %s26, 0
        // Predicated region
        $region33: #{tpu_custom_call.1} parent=31 // pred_check
          %p292 = pneg %p291
        $region34: #{tpu_custom_call.1} parent=31 // pred_check_branch
          %294 = sbr.rel (%p292) target = $region36
        $region35: #{tpu_custom_call.1} parent=31 // pred_region
          %295 = vst [vmem:[#allocation2] sm:$0xff] 0.0
          %296 = vst [vmem:[#allocation2 + $0x8] sm:$0xff] 0.0
          %297 = vst [vmem:[#allocation2 + $0x10] sm:$0xff] 0.0
          %298 = vst [vmem:[#allocation2 + $0x18] sm:$0xff] 0.0
          %299 = vst [vmem:[#allocation2 + $0x20] sm:$0xff] 0.0
          %300 = vst [vmem:[#allocation2 + $0x28] sm:$0xff] 0.0
          %301 = vst [vmem:[#allocation2 + $0x30] sm:$0xff] 0.0
          %302 = vst [vmem:[#allocation2 + $0x38] sm:$0xff] 0.0
        $region36: #{tpu_custom_call.1} parent=31 // pred_fallthru
          _
        %v303 = vld [vmem:[#allocation2] sm:$0xff]
        %v304 = vld [vmem:[#allocation2 + $0x8] sm:$0xff]
        %v305 = vld [vmem:[#allocation2 + $0x10] sm:$0xff]
        %v306 = vld [vmem:[#allocation2 + $0x18] sm:$0xff]
        %v307 = vld [vmem:[#allocation2 + $0x20] sm:$0xff]
        %v308 = vld [vmem:[#allocation2 + $0x28] sm:$0xff]
        %v309 = vld [vmem:[#allocation2 + $0x30] sm:$0xff]
        %v310 = vld [vmem:[#allocation2 + $0x38] sm:$0xff]
        %v311 = vld [vmem:[%s265] sm:$0xff]
        %v312 = vld [vmem:[%s265 + $0x8] sm:$0xff]
        %v313 = vld [vmem:[%s265 + $0x10] sm:$0xff]
        %v314 = vld [vmem:[%s265 + $0x18] sm:$0xff]
        %v315 = vld [vmem:[%s280] sm:$0xff]
        %v316 = vld [vmem:[%s280 + $0x8] sm:$0xff]
        %v317 = vld [vmem:[%s280 + $0x10] sm:$0xff]
        %v318 = vld [vmem:[%s280 + $0x18] sm:$0xff]
        %v319 = vld [vmem:[%s280 + $0x20] sm:$0xff]
        %v320 = vld [vmem:[%s280 + $0x28] sm:$0xff]
        %v321 = vld [vmem:[%s280 + $0x30] sm:$0xff]
        %v322 = vld [vmem:[%s280 + $0x38] sm:$0xff]
        %v323 = vld [vmem:[%s280 + $0x40] sm:$0xf]
        %v324 = vld [vmem:[%s280 + $0x48] sm:$0xf]
        %vm325 = vcmask 293888
        %v327 = vsel %vm325, %v311, 0
        %v330 = vsel %vm325, %v312, 0
        %v333 = vsel %vm325, %v313, 0
        %v336 = vsel %vm325, %v314, 0
        %vm338 = vcmask 1043456
        %v340 = vsel %vm338, %v323, 0
        %v343 = vsel %vm338, %v324, 0
        %345 = vmatprep.subr.mxu0 %v316
        %346 = vmatpush1.msra.mxu0 %v315
        %347 = vmatprep.subr.mxu0 %v318
        %348 = vmatpush1.msra.mxu0 %v317
        %349 = vmatprep.subr.mxu0 %v320
        %350 = vmatpush1.msra.mxu0 %v319
        %351 = vmatprep.subr.mxu0 %v322
        %352 = vmatpush1.msra.mxu0 %v321
        %353 = vmatprep.subr.mxu0 %v343
        %354 = vmatpush1.msra.mxu0 %v340
        %355 = vmatprep.subr.mxu0 0.0
        %356 = vmatpush1.msra.mxu0 0.0
        %357 = vmatprep.subr.mxu0 0.0
        %358 = vmatpush1.msra.mxu0 0.0
        %359 = vmatprep.subr.mxu0 0.0
        %360 = vmatpush1.msra.mxu0 0.0
        %361 = vmatprep.subr.mxu0 0.0
        %362 = vmatpush1.msra.mxu0 0.0
        %363 = vmatprep.subr.mxu0 0.0
        %364 = vmatpush1.msra.mxu0 0.0
        %365 = vmatprep.subr.mxu0 0.0
        %366 = vmatpush1.msra.mxu0 0.0
        %367 = vmatprep.subr.mxu0 0.0
        %368 = vmatpush1.msra.mxu0 0.0
        %369 = vmatprep.subr.mxu0 0.0
        %370 = vmatpush1.msra.mxu0 0.0
        %371 = vmatprep.subr.mxu0 0.0
        %372 = vmatpush1.msra.mxu0 0.0
        %373 = vmatprep.subr.mxu0 0.0
        %374 = vmatpush1.msra.mxu0 0.0
        %375 = vmatprep.subr.mxu0 0.0
        %376 = vmatpush1.msra.mxu0 0.0
        %377 = vmatprep.subr.mxu0 0.0
        %378 = vmatpush1.msra.mxu0 0.0
        %379 = vmatprep.subr.mxu0 0.0
        %380 = vmatpush1.msra.mxu0 0.0
        %381 = vmatprep.subr.mxu0 0.0
        %382 = vmatpush1.msra.mxu0 0.0
        %383 = vmatprep.subr.mxu0 0.0
        %384 = vmatpush1.msra.mxu0 0.0
        %385 = vmatprep.subr.mxu0 0.0
        %386 = vmatpush1.msra.mxu0 0.0
        %387 = vmatprep.subr.mxu0 0.0
        %388 = vmatpush1.msra.mxu0 0.0
        %389 = vmatprep.subr.mxu0 0.0
        %390 = vmatpush1.msra.mxu0 0.0
        %391 = vmatprep.subr.mxu0 0.0
        %392 = vmatpush1.msra.mxu0 0.0
        %393 = vmatprep.subr.mxu0 0.0
        %394 = vmatpush1.msra.mxu0 0.0
        %395 = vmatprep.subr.mxu0 0.0
        %396 = vmatpush1.msra.mxu0 0.0
        %397 = vmatprep.subr.mxu0 0.0
        %398 = vmatpush1.msra.mxu0 0.0
        %399 = vmatprep.subr.mxu0 0.0
        %400 = vmatpush1.msra.mxu0 0.0
        %401 = vmatprep.subr.mxu0 0.0
        %402 = vmatpush1.msra.mxu0 0.0
        %403 = vmatprep.subr.mxu0 0.0
        %404 = vmatpush1.msra.mxu0 0.0
        %405 = vmatprep.subr.mxu0 0.0
        %406 = vmatpush1.msra.mxu0 0.0
        %407 = vmatprep.subr.mxu0 0.0
        %408 = vmatpush1.msra.mxu0 0.0
        %409 = vmatprep.mubr.f32.mxu0 0.0
        %410 = vmatmul.mubr.f32.gmra.mrb[0].mxu0 %v327
        %v411 = vpop.f32.mrb[0].mxu0
        %v412 = vadd.f32 0.0, %v411
        %v413 = vpop.f32.mrb[0].mxu0
        %v414 = vadd.f32 0.0, %v413
        %415 = vmatprep.mubr.f32.mxu0 0.0
        %416 = vmatmul.mubr.f32.gmra.mrb[0].mxu0 %v330
        %v417 = vpop.f32.mrb[0].mxu0
        %v418 = vadd.f32 0.0, %v417
        %v419 = vpop.f32.mrb[0].mxu0
        %v420 = vadd.f32 0.0, %v419
        %421 = vmatprep.mubr.f32.mxu0 0.0
        %422 = vmatmul.mubr.f32.gmra.mrb[0].mxu0 %v333
        %v423 = vpop.f32.mrb[0].mxu0
        %v424 = vadd.f32 0.0, %v423
        %v425 = vpop.f32.mrb[0].mxu0
        %v426 = vadd.f32 0.0, %v425
        %427 = vmatprep.mubr.f32.mxu0 0.0
        %428 = vmatmul.mubr.f32.gmra.mrb[0].mxu0 %v336
        %v429 = vpop.f32.mrb[0].mxu0
        %v430 = vadd.f32 0.0, %v429
        %v431 = vpop.f32.mrb[0].mxu0
        %v432 = vadd.f32 0.0, %v431
        %433 = vdwg.mxu0
        %v434 = vadd.f32 %v303, %v412
        %v435 = vadd.f32 %v304, %v414
        %v436 = vadd.f32 %v305, %v418
        %v437 = vadd.f32 %v306, %v420
        %v438 = vadd.f32 %v307, %v424
        %v439 = vadd.f32 %v308, %v426
        %v440 = vadd.f32 %v309, %v430
        %v441 = vadd.f32 %v310, %v432
        %442 = vst [vmem:[#allocation2] sm:$0xff] %v434
        %443 = vst [vmem:[#allocation2 + $0x8] sm:$0xff] %v435
        %444 = vst [vmem:[#allocation2 + $0x10] sm:$0xff] %v436
        %445 = vst [vmem:[#allocation2 + $0x18] sm:$0xff] %v437
        %446 = vst [vmem:[#allocation2 + $0x20] sm:$0xff] %v438
        %447 = vst [vmem:[#allocation2 + $0x28] sm:$0xff] %v439
        %448 = vst [vmem:[#allocation2 + $0x30] sm:$0xff] %v440
        %449 = vst [vmem:[#allocation2 + $0x38] sm:$0xff] %v441
        // Predicated region
        $region37: #{tpu_custom_call.1} parent=31 // pred_check
          %p450 = pneg %p291
        $region38: #{tpu_custom_call.1} parent=31 // pred_check_branch
          %452 = sbr.rel (%p450) target = $region40
        $region39: #{tpu_custom_call.1} parent=31 // pred_region
          %v453 = vld [vmem:[#allocation2] sm:$0xff]
          %v454 = vld [vmem:[#allocation2 + $0x8] sm:$0xff]
          %v455 = vld [vmem:[#allocation2 + $0x10] sm:$0xff]
          %v456 = vld [vmem:[#allocation2 + $0x18] sm:$0xff]
          %v457 = vld [vmem:[#allocation2 + $0x20] sm:$0xff]
          %v458 = vld [vmem:[#allocation2 + $0x28] sm:$0xff]
          %v459 = vld [vmem:[#allocation2 + $0x30] sm:$0xff]
          %v460 = vld [vmem:[#allocation2 + $0x38] sm:$0xff]
          %v461 = vmul.f32 %v453, 0.16666667
          %v462 = vmul.f32 %v454, 0.16666667
          %v463 = vmul.f32 %v455, 0.16666667
          %v464 = vmul.f32 %v456, 0.16666667
          %v465 = vmul.f32 %v457, 0.16666667
          %v466 = vmul.f32 %v458, 0.16666667
          %v467 = vmul.f32 %v459, 0.16666667
          %v468 = vmul.f32 %v460, 0.16666667
          %v469 = vld [vmem:[%s287] sm:$0xff]
          %v470 = vld [vmem:[%s287 + $0x8] sm:$0xff]
          %v471 = vld [vmem:[%s287 + $0x10] sm:$0xff]
          %v472 = vld [vmem:[%s287 + $0x18] sm:$0xff]
          %474 = vset.pattern.permute.xlu0 0
          %475 = vperm.xlu0 %474, %v469
          %v476 = vpop.permute.xlu0 %475
          %479 = vset.pattern.permute.xlu0 0
          %480 = vperm.xlu0 %479, %v470
          %v481 = vpop.permute.xlu0 %480
          %484 = vset.pattern.permute.xlu0 0
          %485 = vperm.xlu0 %484, %v471
          %v486 = vpop.permute.xlu0 %485
          %489 = vset.pattern.permute.xlu0 0
          %490 = vperm.xlu0 %489, %v472
          %v491 = vpop.permute.xlu0 %490
          %v493 = vadd.f32 %v461, %v476
          %v494 = vadd.f32 %v462, %v476
          %v495 = vadd.f32 %v463, %v481
          %v496 = vadd.f32 %v464, %v481
          %v497 = vadd.f32 %v465, %v486
          %v498 = vadd.f32 %v466, %v486
          %v499 = vadd.f32 %v467, %v491
          %v500 = vadd.f32 %v468, %v491
          %vm501 = vcmp.ge.f32.partialorder %v493, 0.0
          %vm502 = vcmp.ge.f32.partialorder %v494, 0.0
          %vm503 = vcmp.ge.f32.partialorder %v495, 0.0
          %vm504 = vcmp.ge.f32.partialorder %v496, 0.0
          %vm505 = vcmp.ge.f32.partialorder %v497, 0.0
          %vm506 = vcmp.ge.f32.partialorder %v498, 0.0
          %vm507 = vcmp.ge.f32.partialorder %v499, 0.0
          %vm508 = vcmp.ge.f32.partialorder %v500, 0.0
          %v509 = vmul.f32 %v493, 0.2
          %v510 = vmul.f32 %v494, 0.2
          %v511 = vmul.f32 %v495, 0.2
          %v512 = vmul.f32 %v496, 0.2
          %v513 = vmul.f32 %v497, 0.2
          %v514 = vmul.f32 %v498, 0.2
          %v515 = vmul.f32 %v499, 0.2
          %v516 = vmul.f32 %v500, 0.2
          %v517 = vsel %vm501, %v493, %v509
          %v518 = vsel %vm502, %v494, %v510
          %v519 = vsel %vm503, %v495, %v511
          %v520 = vsel %vm504, %v496, %v512
          %v521 = vsel %vm505, %v497, %v513
          %v522 = vsel %vm506, %v498, %v514
          %v523 = vsel %vm507, %v499, %v515
          %v524 = vsel %vm508, %v500, %v516
          %v525 = vmul.f32 %v517, 1.4142135
          %v526 = vmul.f32 %v518, 1.4142135
          %v527 = vmul.f32 %v519, 1.4142135
          %v528 = vmul.f32 %v520, 1.4142135
          %v529 = vmul.f32 %v521, 1.4142135
          %v530 = vmul.f32 %v522, 1.4142135
          %v531 = vmul.f32 %v523, 1.4142135
          %v532 = vmul.f32 %v524, 1.4142135
          %v533 = vmax.f32 %v525, -256.0
          %v534 = vmax.f32 %v526, -256.0
          %v535 = vmax.f32 %v527, -256.0
          %v536 = vmax.f32 %v528, -256.0
          %v537 = vmax.f32 %v529, -256.0
          %v538 = vmax.f32 %v530, -256.0
          %v539 = vmax.f32 %v531, -256.0
          %v540 = vmax.f32 %v532, -256.0
          %v541 = vmin.f32 %v533, 256.0
          %v542 = vmin.f32 %v534, 256.0
          %v543 = vmin.f32 %v535, 256.0
          %v544 = vmin.f32 %v536, 256.0
          %v545 = vmin.f32 %v537, 256.0
          %v546 = vmin.f32 %v538, 256.0
          %v547 = vmin.f32 %v539, 256.0
          %v548 = vmin.f32 %v540, 256.0
          %549 = vst [vmem:[%s257] sm:$0xff] %v541
          %550 = vst [vmem:[%s257 + $0x8] sm:$0xff] %v542
          %551 = vst [vmem:[%s257 + $0x10] sm:$0xff] %v543
          %552 = vst [vmem:[%s257 + $0x18] sm:$0xff] %v544
          %553 = vst [vmem:[%s257 + $0x20] sm:$0xff] %v545
          %554 = vst [vmem:[%s257 + $0x28] sm:$0xff] %v546
          %555 = vst [vmem:[%s257 + $0x30] sm:$0xff] %v547
          %556 = vst [vmem:[%s257 + $0x38] sm:$0xff] %v548
        $region40: #{tpu_custom_call.1} parent=31 // pred_fallthru
          _
        %s557 = sand.u32 %s139, 1
        %s558 = scalar_lea.sflag [#allocation4], %s557
        %s559 = sand.u32 %s139, 1
        %s560 = smul.addr %s559, 64
        %s561 = scalar_lea.vmem [#allocation3], %s560
        // Predicated region
        $region41: #{tpu_custom_call.1} parent=31 // pred_check
          %p562 = pneg %p149
        $region42: #{tpu_custom_call.1} parent=31 // pred_check_branch
          %564 = sbr.rel (%p562) target = $region44
        $region43: #{tpu_custom_call.1} parent=31 // pred_region
          %s565 = smul.u32 4, %s24
          %s566 = smul.u32 2, %s25
          %s568 = ssub.s32 1024, 1024
          %569 = vsyncadd %s558, %s568
          %s570 = smul.addr %s565, 2
          %s571 = sadd.s32 %s566, %s570
          %s572 = smul.addr %s23, 8
          %s573 = sadd.s32 %s571, %s572
          %s574 = smul.addr %s573, 128
          %s575 = scalar_lea.hbm %s3, %s574
          %s576 = sshll.u32 %s561, 4
          %s577 = int_to_ptr.vmem [resolvable:$true] %s576
          %582 = dma.vmem_to_hbm [thread:$0]  %s577, 1024, %s575, %s558, 256, 256, 16
        $region44: #{tpu_custom_call.1} parent=31 // pred_fallthru
          _
      $region32: #{tpu_custom_call.1} parent=5 // pred_fallthru
        _
      %p583 = scmp.le.s32.totalorder 2, %s12
      // Predicated region
      $region45: #{tpu_custom_call.1} parent=5 // pred_check
        %p584 = pneg %p583
      $region46: #{tpu_custom_call.1} parent=5 // pred_check_branch
        %586 = sbr.rel (%p584) target = $region48
      $region47: #{tpu_custom_call.1} parent=5 // pred_region
        %s587 = ssub.s32 %s12, 2
        // Predicated region
        $region49: #{tpu_custom_call.1} parent=47 // pred_check
          %p588 = pneg %p155
        $region50: #{tpu_custom_call.1} parent=47 // pred_check_branch
          %590 = sbr.rel (%p588) target = $region52
        $region51: #{tpu_custom_call.1} parent=47 // pred_region
          %s591 = sand.u32 %s140, 1
          %s592 = scalar_lea.sflag [#allocation4], %s591
          %s593 = sand.u32 %s140, 1
          %s594 = smul.addr %s593, 64
          %s595 = scalar_lea.vmem [#allocation3], %s594
          %596 = dma.done %s592, 1024
        $region52: #{tpu_custom_call.1} parent=47 // pred_fallthru
          _
      $region48: #{tpu_custom_call.1} parent=5 // pred_fallthru
        _
    $region6: #{tpu_custom_call.1} parent=1 // loop_footer
      %s16 = sadd.s32 1, %s12
    $region7: #{tpu_custom_call.1} parent=1 // loop_footer_branch
      %11 = sbr.rel target = $region3
    $region8: #{tpu_custom_call.1} parent=1 // loop_exit
      _
    %597 = vsyncpa [#allocation4], 1
    %s598 = scalar_lea.sflag [#allocation4], 1
    %599 = vsyncpa %s598, 1

</llo_original>
